<compile_context>
chip_gen: v7x
topology: tpu7x:2x2x1
jax: 0.10.0
libtpu: 0.0.40
codegen_flags: <defaults>
</compile_context>

<pallas_src>
import jax
import jax.numpy as jnp
from jax.experimental import pallas as pl
from jax.experimental.pallas import tpu as pltpu

EMB_DIM = 768            # 6 x 128 lanes -> unmasked, lane-dense stores
NUM_CLASSES = 7          # nn.Embedding(7, 768)
NUM_CLASSES_PAD = 8      # pad rows to a sublane-friendly count
MAX_TILE_N = 1024        # rows per grid step (~3 MiB f32 output block)


def _round_up(x, m):
    return ((x + m - 1) // m) * m


def _embedding_gather_kernel(idx_ref, emb_ref, out_ref):
    """out[n, :] = emb[idx[n, 0], :] via one-hot matmul on the MXU."""
    idx = idx_ref[...]                                     # (TILE_N, 1) int32
    n = idx.shape[0]
    k = emb_ref.shape[0]                                   # padded class count
    cls = jax.lax.broadcasted_iota(jnp.int32, (n, k), 1)   # (TILE_N, K)
    onehot = (idx == cls).astype(emb_ref.dtype)            # (TILE_N, K)
    out_ref[...] = jnp.dot(
        onehot, emb_ref[...], preferred_element_type=jnp.float32
    ).astype(out_ref.dtype)


def pad_emo_table(emo_emb_weight):
    """Pad the (7, 768) table to (8, 768) once, outside the hot path."""
    return jnp.pad(emo_emb_weight.astype(jnp.float32), ((0, 1), (0, 0)))


def emotion_polarity_embedding(detect_emo, emb_pad):
    """detect_emo: (B, L) int32 in [0, 7); emb_pad: (8, 768) f32 (pre-padded).

    Returns emo_clause_emb: (B, L, 768) f32  (matches torch's output).
    """
    b, l = detect_emo.shape
    n = b * l
    idx_flat = detect_emo.reshape(n, 1).astype(jnp.int32)

    # Row-tile size: multiple of 8 sublanes, capped at MAX_TILE_N.
    tile_n = min(MAX_TILE_N, _round_up(n, 8))
    num_tiles = pl.cdiv(n, tile_n)

    out_flat = pl.pallas_call(
        _embedding_gather_kernel,
        out_shape=jax.ShapeDtypeStruct((n, EMB_DIM), jnp.float32),
        grid_spec=pltpu.PrefetchScalarGridSpec(
            num_scalar_prefetch=0,
            grid=(num_tiles,),
            in_specs=[
                # (TILE_N, 1) index block; last dim equals full array dim.
                pl.BlockSpec((tile_n, 1), lambda i: (i, 0)),
                # Tiny table stays resident (constant block index).
                pl.BlockSpec((NUM_CLASSES_PAD, EMB_DIM), lambda i: (0, 0)),
            ],
            # Lane-dense (TILE_N, 768) output block, double-buffered writeback.
            out_specs=pl.BlockSpec((tile_n, EMB_DIM), lambda i: (i, 0)),
        ),
        compiler_params=pltpu.CompilerParams(
            dimension_semantics=("parallel",),   # 2x on v7x (2 TCs); no-op v5e/v6e
        ),
    )(idx_flat, emb_pad)

    return out_flat.reshape(b, l, EMB_DIM)


if __name__ == "__main__":
    key = jax.random.PRNGKey(0)
    k_emb, k_flag, k_idx1, k_idx2 = jax.random.split(key, 4)

    # Deterministic parameter init (nn.Embedding default: N(0, 1)).
    emo_emb_weight = jax.random.normal(k_emb, (NUM_CLASSES, EMB_DIM), jnp.float32)
    # flag_emb is declared in __init__ but unused in forward; init for parity.
    flag_emb_weight = jax.random.normal(k_flag, (2, EMB_DIM), jnp.float32)

    # Pre-pad the table once (outside the per-call hot path).
    emb_pad = pad_emo_table(emo_emb_weight)

    # TODO(synk): thulac/BERT tokenization + emotion-dictionary lookup that
    # builds `detect_emo` from raw strings is Python text processing with no
    # Pallas equivalent; we synthesize the resulting integer index tensor.

    # Case 1: small shape from the module spec (single grid step).
    batch, max_doc_len = 2, 8
    detect_emo = jax.random.randint(
        k_idx1, (batch, max_doc_len), 0, NUM_CLASSES, dtype=jnp.int32)
    emo_clause_emb = emotion_polarity_embedding(detect_emo, emb_pad)
    emo_clause_emb = jax.block_until_ready(emo_clause_emb)
    ref = jnp.take(emo_emb_weight, detect_emo, axis=0)
    assert emo_clause_emb.shape == (batch, max_doc_len, EMB_DIM)
    assert jnp.allclose(emo_clause_emb, ref, atol=1e-6), "mismatch vs reference (small)"

    # Case 2: larger shape exercising the multi-tile grid + partial last tile.
    batch2, max_doc_len2 = 4, 300            # n = 1200 -> 2 grid steps of 1024
    detect_emo2 = jax.random.randint(
        k_idx2, (batch2, max_doc_len2), 0, NUM_CLASSES, dtype=jnp.int32)
    emo_clause_emb2 = emotion_polarity_embedding(detect_emo2, emb_pad)
    emo_clause_emb2 = jax.block_until_ready(emo_clause_emb2)
    ref2 = jnp.take(emo_emb_weight, detect_emo2, axis=0)
    assert emo_clause_emb2.shape == (batch2, max_doc_len2, EMB_DIM)
    assert jnp.allclose(emo_clause_emb2, ref2, atol=1e-6), "mismatch vs reference (tiled)"

    print("KERNEL_OK")
</pallas_src>

<mosaic_0001>
module attributes {stable_mosaic.version = 11 : i64} {
  func.func @_embedding_gather_kernel(%arg0: i32, %arg1: memref<16x1xi32, #tpu.memory_space<vmem>>, %arg2: memref<8x768xf32, #tpu.memory_space<vmem>>, %arg3: memref<16x768xf32, #tpu.memory_space<vmem>>) attributes {dimension_semantics = [#tpu.dimension_semantics<parallel>], iteration_bounds = array<i64: 1>, scalar_prefetch = 0 : i64, scratch_operands = 0 : i64, tpu.core_type = #tpu.core_type<tc>, window_params = [{transform_indices = @transform_0, window_bounds = array<i64: 16, 1>}, {pipeline_mode = #tpu.pipeline_mode<synchronous>, transform_indices = @transform_1, window_bounds = array<i64: 8, 768>}, {transform_indices = @transform_2, window_bounds = array<i64: 16, 768>}]} {
    %c0 = arith.constant 0 : index
    %c0_0 = arith.constant 0 : index
    %0 = vector.load %arg1[%c0, %c0_0] : memref<16x1xi32, #tpu.memory_space<vmem>>, vector<16x1xi32>
    %1 = tpu.iota {dimensions = array<i32: 1>} : vector<16x8xi32>
    %2 = vector.broadcast %0 : vector<16x1xi32> to vector<16x8xi32>
    %3 = arith.cmpi eq, %2, %1 : vector<16x8xi32>
    %4 = arith.extui %3 : vector<16x8xi1> to vector<16x8xi32>
    %5 = arith.sitofp %4 : vector<16x8xi32> to vector<16x8xf32>
    %c0_1 = arith.constant 0 : index
    %c0_2 = arith.constant 0 : index
    %6 = vector.load %arg2[%c0_1, %c0_2] : memref<8x768xf32, #tpu.memory_space<vmem>>, vector<8x768xf32>
    %cst = arith.constant dense<0.000000e+00> : vector<16x768xf32>
    %7 = tpu.matmul %5, %6, %cst {dimension_numbers = #tpu.dot_dimension_numbers<[1], [0], [0], [1], [0, 0, 1, 1], [], []>} : vector<16x8xf32>, vector<8x768xf32>, vector<16x768xf32> -> vector<16x768xf32>
    %c0_3 = arith.constant 0 : index
    %c0_4 = arith.constant 0 : index
    %8 = vector.load %arg3[%c0_3, %c0_4] : memref<16x768xf32, #tpu.memory_space<vmem>>, vector<16x768xf32>
    tpu.vector_store %arg3[%c0_3, %c0_4], %7 {strides = array<i32>} : memref<16x768xf32, #tpu.memory_space<vmem>>, vector<16x768xf32>,
    return
  }
  func.func @transform_0(%arg0: i32) -> (i32, i32) {
    %c0_i32 = arith.constant 0 : i32
    %c0_i32_0 = arith.constant 0 : i32
    return %arg0, %c0_i32 : i32, i32
  }
  func.func @transform_1(%arg0: i32) -> (i32, i32) {
    %c0_i32 = arith.constant 0 : i32
    %c0_i32_0 = arith.constant 0 : i32
    %c0_i32_1 = arith.constant 0 : i32
    return %c0_i32, %c0_i32_0 : i32, i32
  }
  func.func @transform_2(%arg0: i32) -> (i32, i32) {
    %c0_i32 = arith.constant 0 : i32
    %c0_i32_0 = arith.constant 0 : i32
    return %arg0, %c0_i32 : i32, i32
  }
}

</mosaic_0001>

<llo_original>
// kernel: tpu_custom_call.1
$region0: #{tpu_custom_call.1}
  #allocation0 [shape = 'u32[]', space=smem, size = 0x4, offset = 0x4, fixed_abs, tag = 'smem constant byte address 0x4 - core index']
  #allocation1 [shape = 'u32[144,128]{1,0:T(1,128)}', space=vmem, size = 0x12000, scoped, tag = 'internal scratch']
  %s0 = inlined_call_operand.vmem [shape: s32[16,1], index: 0, kind: input, shape index: {}]
  %s1 = inlined_call_operand.hbm [shape: f32[8,768], index: 1, kind: input, shape index: {}]
  %s2 = inlined_call_operand.hbm [shape: f32[16,768], index: 2, kind: output, shape index: {}]
  %s3 = sld [smem:[#allocation0]]
  $region22: #{tpu_custom_call.1} parent=0
    _
  %s5 = ssub.s32 1, %s3
  %s6 = scalar_select 0, %s5, %s3
  $region1: #{tpu_custom_call.1} parent=0
    #allocation2 [shape = 'u8[24576]{0}', space=vmem, size = 0x6000, scoped, tag = 'input window, operand 1, single buffered']
    #allocation3 [shape = 's32[1]{0}', space=sflag, size = 0x4, scoped, tag = 'scoped memory for tpu_custom_call.1']
    #allocation4 [shape = 's32[1]{0}', space=sflag, size = 0x4, scoped, tag = 'scoped memory for tpu_custom_call.1']
    #allocation5 [shape = 'u8[49152]{0}', space=vmem, size = 0xc000, scoped, tag = 'output window, operand 0, single buffered']
    %7 = vsyncpa [#allocation3], 0
    %8 = vsyncpa [#allocation4], 0
    // Predicated region
    $region2: #{tpu_custom_call.1} parent=1 // pred_check
      _
    $region3: #{tpu_custom_call.1} parent=1 // pred_check_branch
      %10 = sbr.rel (0) target = $region5
    $region4: #{tpu_custom_call.1} parent=1 // pred_region
      _
    $region5: #{tpu_custom_call.1} parent=1 // pred_fallthru
      _
    // Predicated region
    $region6: #{tpu_custom_call.1} parent=1 // pred_check
      _
    $region7: #{tpu_custom_call.1} parent=1 // pred_check_branch
      %12 = sbr.rel (0) target = $region9
    $region8: #{tpu_custom_call.1} parent=1 // pred_region
      %s14 = ssub.s32 768, 768
      %15 = vsyncadd [#allocation3], %s14
      %s17 = sshll.u32 [#allocation2], 4
      %s18 = int_to_ptr.vmem [resolvable:$true] %s17
      %20 = dma.hbm_to_vmem [thread:$0]  %s1, 768, %s18, [#allocation3]
    $region9: #{tpu_custom_call.1} parent=1 // pred_fallthru
      _
    // Predicated region
    $region10: #{tpu_custom_call.1} parent=1 // pred_check
      _
    $region11: #{tpu_custom_call.1} parent=1 // pred_check_branch
      %22 = sbr.rel (0) target = $region13
    $region12: #{tpu_custom_call.1} parent=1 // pred_region
      %23 = dma.done [#allocation3], 768
    $region13: #{tpu_custom_call.1} parent=1 // pred_fallthru
      _
    %v24 = vld [vmem:[%s0] sm:$0xff]
    %v25 = vld [vmem:[%s0 + $0x8] sm:$0xff]
    %v26 = vlaneseq
    %v27 = vand.u32 %v26, 127
    %28 = vset.pattern.permute.xlu0 0
    %29 = vperm.xlu0 %28, %v24
    %v30 = vpop.permute.xlu0 %29
    %31 = vset.pattern.permute.xlu0 0
    %32 = vperm.xlu0 %31, %v25
    %v33 = vpop.permute.xlu0 %32
    %vm34 = vcmp.eq.s32.totalorder %v30, %v27
    %vm35 = vcmp.eq.s32.totalorder %v33, %v27
    %v36 = vsel %vm34, 1, 0
    %v37 = vsel %vm35, 1, 0
    %v38 = vcvt.s32.f32 %v36
    %v39 = vcvt.s32.f32 %v37
    %v40 = vld [vmem:[#allocation2] sm:$0xff]
    %v41 = vld [vmem:[#allocation2 + $0x8] sm:$0xff]
    %v42 = vld [vmem:[#allocation2 + $0x10] sm:$0xff]
    %v43 = vld [vmem:[#allocation2 + $0x18] sm:$0xff]
    %v44 = vld [vmem:[#allocation2 + $0x20] sm:$0xff]
    %v45 = vld [vmem:[#allocation2 + $0x28] sm:$0xff]
    %vm46 = vcmask 64512
    %v48 = vsel %vm46, %v38, 0
    %v51 = vsel %vm46, %v39, 0
    %53 = vmatprep.subr.mxu0 %v41
    %54 = vmatpush1.msra.mxu0 %v40
    %55 = vmatprep.subr.mxu0 0.0
    %56 = vmatpush1.msra.mxu0 0.0
    %57 = vmatprep.subr.mxu0 0.0
    %58 = vmatpush1.msra.mxu0 0.0
    %59 = vmatprep.subr.mxu0 0.0
    %60 = vmatpush1.msra.mxu0 0.0
    %61 = vmatprep.subr.mxu0 0.0
    %62 = vmatpush1.msra.mxu0 0.0
    %63 = vmatprep.subr.mxu0 0.0
    %64 = vmatpush1.msra.mxu0 0.0
    %65 = vmatprep.subr.mxu0 0.0
    %66 = vmatpush1.msra.mxu0 0.0
    %67 = vmatprep.subr.mxu0 0.0
    %68 = vmatpush1.msra.mxu0 0.0
    %69 = vmatprep.subr.mxu0 0.0
    %70 = vmatpush1.msra.mxu0 0.0
    %71 = vmatprep.subr.mxu0 0.0
    %72 = vmatpush1.msra.mxu0 0.0
    %73 = vmatprep.subr.mxu0 0.0
    %74 = vmatpush1.msra.mxu0 0.0
    %75 = vmatprep.subr.mxu0 0.0
    %76 = vmatpush1.msra.mxu0 0.0
    %77 = vmatprep.subr.mxu0 0.0
    %78 = vmatpush1.msra.mxu0 0.0
    %79 = vmatprep.subr.mxu0 0.0
    %80 = vmatpush1.msra.mxu0 0.0
    %81 = vmatprep.subr.mxu0 0.0
    %82 = vmatpush1.msra.mxu0 0.0
    %83 = vmatprep.subr.mxu0 0.0
    %84 = vmatpush1.msra.mxu0 0.0
    %85 = vmatprep.subr.mxu0 0.0
    %86 = vmatpush1.msra.mxu0 0.0
    %87 = vmatprep.subr.mxu0 0.0
    %88 = vmatpush1.msra.mxu0 0.0
    %89 = vmatprep.subr.mxu0 0.0
    %90 = vmatpush1.msra.mxu0 0.0
    %91 = vmatprep.subr.mxu0 0.0
    %92 = vmatpush1.msra.mxu0 0.0
    %93 = vmatprep.subr.mxu0 0.0
    %94 = vmatpush1.msra.mxu0 0.0
    %95 = vmatprep.subr.mxu0 0.0
    %96 = vmatpush1.msra.mxu0 0.0
    %97 = vmatprep.subr.mxu0 0.0
    %98 = vmatpush1.msra.mxu0 0.0
    %99 = vmatprep.subr.mxu0 0.0
    %100 = vmatpush1.msra.mxu0 0.0
    %101 = vmatprep.subr.mxu0 0.0
    %102 = vmatpush1.msra.mxu0 0.0
    %103 = vmatprep.subr.mxu0 0.0
    %104 = vmatpush1.msra.mxu0 0.0
    %105 = vmatprep.subr.mxu0 0.0
    %106 = vmatpush1.msra.mxu0 0.0
    %107 = vmatprep.subr.mxu0 0.0
    %108 = vmatpush1.msra.mxu0 0.0
    %109 = vmatprep.subr.mxu0 0.0
    %110 = vmatpush1.msra.mxu0 0.0
    %111 = vmatprep.subr.mxu0 0.0
    %112 = vmatpush1.msra.mxu0 0.0
    %113 = vmatprep.subr.mxu0 0.0
    %114 = vmatpush1.msra.mxu0 0.0
    %115 = vmatprep.subr.mxu0 0.0
    %116 = vmatpush1.msra.mxu0 0.0
    %117 = vmatprep.mubr.f32.mxu0 0.0
    %118 = vmatmul.mubr.f32.gmra.mrb[0].mxu0 %v48
    %v119 = vpop.f32.mrb[0].mxu0
    %v120 = vadd.f32 0.0, %v119
    %v121 = vpop.f32.mrb[0].mxu0
    %v122 = vadd.f32 0.0, %v121
    %123 = vmatprep.mubr.f32.mxu0 0.0
    %124 = vmatmul.mubr.f32.gmra.mrb[0].mxu0 %v51
    %v125 = vpop.f32.mrb[0].mxu0
    %v126 = vadd.f32 0.0, %v125
    %v127 = vpop.f32.mrb[0].mxu0
    %v128 = vadd.f32 0.0, %v127
    %129 = vdwg.mxu0
    %130 = vmatprep.subr.mxu0 %v43
    %131 = vmatpush1.msra.mxu0 %v42
    %132 = vmatprep.subr.mxu0 0.0
    %133 = vmatpush1.msra.mxu0 0.0
    %134 = vmatprep.subr.mxu0 0.0
    %135 = vmatpush1.msra.mxu0 0.0
    %136 = vmatprep.subr.mxu0 0.0
    %137 = vmatpush1.msra.mxu0 0.0
    %138 = vmatprep.subr.mxu0 0.0
    %139 = vmatpush1.msra.mxu0 0.0
    %140 = vmatprep.subr.mxu0 0.0
    %141 = vmatpush1.msra.mxu0 0.0
    %142 = vmatprep.subr.mxu0 0.0
    %143 = vmatpush1.msra.mxu0 0.0
    %144 = vmatprep.subr.mxu0 0.0
    %145 = vmatpush1.msra.mxu0 0.0
    %146 = vmatprep.subr.mxu0 0.0
    %147 = vmatpush1.msra.mxu0 0.0
    %148 = vmatprep.subr.mxu0 0.0
    %149 = vmatpush1.msra.mxu0 0.0
    %150 = vmatprep.subr.mxu0 0.0
    %151 = vmatpush1.msra.mxu0 0.0
    %152 = vmatprep.subr.mxu0 0.0
    %153 = vmatpush1.msra.mxu0 0.0
    %154 = vmatprep.subr.mxu0 0.0
    %155 = vmatpush1.msra.mxu0 0.0
    %156 = vmatprep.subr.mxu0 0.0
    %157 = vmatpush1.msra.mxu0 0.0
    %158 = vmatprep.subr.mxu0 0.0
    %159 = vmatpush1.msra.mxu0 0.0
    %160 = vmatprep.subr.mxu0 0.0
    %161 = vmatpush1.msra.mxu0 0.0
    %162 = vmatprep.subr.mxu0 0.0
    %163 = vmatpush1.msra.mxu0 0.0
    %164 = vmatprep.subr.mxu0 0.0
    %165 = vmatpush1.msra.mxu0 0.0
    %166 = vmatprep.subr.mxu0 0.0
    %167 = vmatpush1.msra.mxu0 0.0
    %168 = vmatprep.subr.mxu0 0.0
    %169 = vmatpush1.msra.mxu0 0.0
    %170 = vmatprep.subr.mxu0 0.0
    %171 = vmatpush1.msra.mxu0 0.0
    %172 = vmatprep.subr.mxu0 0.0
    %173 = vmatpush1.msra.mxu0 0.0
    %174 = vmatprep.subr.mxu0 0.0
    %175 = vmatpush1.msra.mxu0 0.0
    %176 = vmatprep.subr.mxu0 0.0
    %177 = vmatpush1.msra.mxu0 0.0
    %178 = vmatprep.subr.mxu0 0.0
    %179 = vmatpush1.msra.mxu0 0.0
    %180 = vmatprep.subr.mxu0 0.0
    %181 = vmatpush1.msra.mxu0 0.0
    %182 = vmatprep.subr.mxu0 0.0
    %183 = vmatpush1.msra.mxu0 0.0
    %184 = vmatprep.subr.mxu0 0.0
    %185 = vmatpush1.msra.mxu0 0.0
    %186 = vmatprep.subr.mxu0 0.0
    %187 = vmatpush1.msra.mxu0 0.0
    %188 = vmatprep.subr.mxu0 0.0
    %189 = vmatpush1.msra.mxu0 0.0
    %190 = vmatprep.subr.mxu0 0.0
    %191 = vmatpush1.msra.mxu0 0.0
    %192 = vmatprep.subr.mxu0 0.0
    %193 = vmatpush1.msra.mxu0 0.0
    %194 = vmatprep.mubr.f32.mxu0 0.0
    %195 = vmatmul.mubr.f32.gmra.mrb[0].mxu0 %v48
    %v196 = vpop.f32.mrb[0].mxu0
    %v197 = vadd.f32 0.0, %v196
    %v198 = vpop.f32.mrb[0].mxu0
    %v199 = vadd.f32 0.0, %v198
    %200 = vmatprep.mubr.f32.mxu0 0.0
    %201 = vmatmul.mubr.f32.gmra.mrb[0].mxu0 %v51
    %v202 = vpop.f32.mrb[0].mxu0
    %v203 = vadd.f32 0.0, %v202
    %v204 = vpop.f32.mrb[0].mxu0
    %v205 = vadd.f32 0.0, %v204
    %206 = vdwg.mxu0
    %207 = vmatprep.subr.mxu0 %v45
    %208 = vmatpush1.msra.mxu0 %v44
    %209 = vmatprep.subr.mxu0 0.0
    %210 = vmatpush1.msra.mxu0 0.0
    %211 = vmatprep.subr.mxu0 0.0
    %212 = vmatpush1.msra.mxu0 0.0
    %213 = vmatprep.subr.mxu0 0.0
    %214 = vmatpush1.msra.mxu0 0.0
    %215 = vmatprep.subr.mxu0 0.0
    %216 = vmatpush1.msra.mxu0 0.0
    %217 = vmatprep.subr.mxu0 0.0
    %218 = vmatpush1.msra.mxu0 0.0
    %219 = vmatprep.subr.mxu0 0.0
    %220 = vmatpush1.msra.mxu0 0.0
    %221 = vmatprep.subr.mxu0 0.0
    %222 = vmatpush1.msra.mxu0 0.0
    %223 = vmatprep.subr.mxu0 0.0
    %224 = vmatpush1.msra.mxu0 0.0
    %225 = vmatprep.subr.mxu0 0.0
    %226 = vmatpush1.msra.mxu0 0.0
    %227 = vmatprep.subr.mxu0 0.0
    %228 = vmatpush1.msra.mxu0 0.0
    %229 = vmatprep.subr.mxu0 0.0
    %230 = vmatpush1.msra.mxu0 0.0
    %231 = vmatprep.subr.mxu0 0.0
    %232 = vmatpush1.msra.mxu0 0.0
    %233 = vmatprep.subr.mxu0 0.0
    %234 = vmatpush1.msra.mxu0 0.0
    %235 = vmatprep.subr.mxu0 0.0
    %236 = vmatpush1.msra.mxu0 0.0
    %237 = vmatprep.subr.mxu0 0.0
    %238 = vmatpush1.msra.mxu0 0.0
    %239 = vmatprep.subr.mxu0 0.0
    %240 = vmatpush1.msra.mxu0 0.0
    %241 = vmatprep.subr.mxu0 0.0
    %242 = vmatpush1.msra.mxu0 0.0
    %243 = vmatprep.subr.mxu0 0.0
    %244 = vmatpush1.msra.mxu0 0.0
    %245 = vmatprep.subr.mxu0 0.0
    %246 = vmatpush1.msra.mxu0 0.0
    %247 = vmatprep.subr.mxu0 0.0
    %248 = vmatpush1.msra.mxu0 0.0
    %249 = vmatprep.subr.mxu0 0.0
    %250 = vmatpush1.msra.mxu0 0.0
    %251 = vmatprep.subr.mxu0 0.0
    %252 = vmatpush1.msra.mxu0 0.0
    %253 = vmatprep.subr.mxu0 0.0
    %254 = vmatpush1.msra.mxu0 0.0
    %255 = vmatprep.subr.mxu0 0.0
    %256 = vmatpush1.msra.mxu0 0.0
    %257 = vmatprep.subr.mxu0 0.0
    %258 = vmatpush1.msra.mxu0 0.0
    %259 = vmatprep.subr.mxu0 0.0
    %260 = vmatpush1.msra.mxu0 0.0
    %261 = vmatprep.subr.mxu0 0.0
    %262 = vmatpush1.msra.mxu0 0.0
    %263 = vmatprep.subr.mxu0 0.0
    %264 = vmatpush1.msra.mxu0 0.0
    %265 = vmatprep.subr.mxu0 0.0
    %266 = vmatpush1.msra.mxu0 0.0
    %267 = vmatprep.subr.mxu0 0.0
    %268 = vmatpush1.msra.mxu0 0.0
    %269 = vmatprep.subr.mxu0 0.0
    %270 = vmatpush1.msra.mxu0 0.0
    %271 = vmatprep.mubr.f32.mxu0 0.0
    %272 = vmatmul.mubr.f32.gmra.mrb[0].mxu0 %v48
    %v273 = vpop.f32.mrb[0].mxu0
    %v274 = vadd.f32 0.0, %v273
    %v275 = vpop.f32.mrb[0].mxu0
    %v276 = vadd.f32 0.0, %v275
    %277 = vmatprep.mubr.f32.mxu0 0.0
    %278 = vmatmul.mubr.f32.gmra.mrb[0].mxu0 %v51
    %v279 = vpop.f32.mrb[0].mxu0
    %v280 = vadd.f32 0.0, %v279
    %v281 = vpop.f32.mrb[0].mxu0
    %v282 = vadd.f32 0.0, %v281
    %283 = vdwg.mxu0
    %284 = vst [vmem:[#allocation5] sm:$0xff] %v120
    %285 = vst [vmem:[#allocation5 + $0x8] sm:$0xff] %v122
    %286 = vst [vmem:[#allocation5 + $0x10] sm:$0xff] %v197
    %287 = vst [vmem:[#allocation5 + $0x18] sm:$0xff] %v199
    %288 = vst [vmem:[#allocation5 + $0x20] sm:$0xff] %v274
    %289 = vst [vmem:[#allocation5 + $0x28] sm:$0xff] %v276
    %290 = vst [vmem:[#allocation5 + $0x30] sm:$0xff] %v126
    %291 = vst [vmem:[#allocation5 + $0x38] sm:$0xff] %v128
    %292 = vst [vmem:[#allocation5 + $0x40] sm:$0xff] %v203
    %293 = vst [vmem:[#allocation5 + $0x48] sm:$0xff] %v205
    %294 = vst [vmem:[#allocation5 + $0x50] sm:$0xff] %v280
    %295 = vst [vmem:[#allocation5 + $0x58] sm:$0xff] %v282
    // Predicated region
    $region14: #{tpu_custom_call.1} parent=1 // pred_check
      _
    $region15: #{tpu_custom_call.1} parent=1 // pred_check_branch
      %297 = sbr.rel (0) target = $region17
    $region16: #{tpu_custom_call.1} parent=1 // pred_region
      %s299 = ssub.s32 1536, 1536
      %300 = vsyncadd [#allocation4], %s299
      %s301 = sshll.u32 [#allocation5], 4
      %s302 = int_to_ptr.vmem [resolvable:$true] %s301
      %307 = dma.vmem_to_hbm [thread:$0]  %s302, 1536, %s2, [#allocation4], 768, 768, 48
    $region17: #{tpu_custom_call.1} parent=1 // pred_fallthru
      _
    // Predicated region
    $region18: #{tpu_custom_call.1} parent=1 // pred_check
      _
    $region19: #{tpu_custom_call.1} parent=1 // pred_check_branch
      %309 = sbr.rel (0) target = $region21
    $region20: #{tpu_custom_call.1} parent=1 // pred_region
      %310 = dma.done [#allocation4], 1536
    $region21: #{tpu_custom_call.1} parent=1 // pred_fallthru
      _
    %311 = vsyncpa [#allocation3], 1
    %312 = vsyncpa [#allocation4], 1

</llo_original>
